<compile_context>
chip_gen: v5e
topology: v5e:2x2
jax: 0.10.0
libtpu: 0.0.40
codegen_flags: <defaults>
</compile_context>

<pallas_src>
from collections import OrderedDict

import numpy as np
import jax
import jax.numpy as jnp
from jax.experimental import pallas as pl
from jax.experimental.pallas import tpu as pltpu


_TB_CAP = 4096           # max batch-tile rows (multiple of 8); ~4.5 MiB of
                         # double-buffered blocks at D=32 / O=107, safely
                         # inside v5e's 16 MiB default scoped VMEM.
_MIN_PALLAS_BATCH = 256  # below this, a plain XLA dot beats kernel dispatch.


def _round_up(x, m):
    return ((x + m - 1) // m) * m


def _pick_batch_tile(batch):
    """Batch tile: big enough to amortize per-step pipeline overhead, small
    enough to fit v5e's default scoped VMEM, and chosen so the grid has >= 2
    blocks whenever possible so "parallel" can shard the batch axis across
    both v7x TensorCores (each TC streams its own blocks)."""
    if batch <= 16:
        return batch  # single block; block dim == full array dim (legal)
    return min(_TB_CAP, _round_up(pl.cdiv(batch, 2), 8))


def _make_decoder_kernel(slices):
    """slices: static tuple of (col_offset, col_size) per observation key."""

    def kernel(x_ref, w_ref, b_ref, *o_refs):
        # x_ref: (TB, D)  w_ref: (D, O)  b_ref: (1, O)  o_refs[k]: (TB, size_k)
        acc = jnp.dot(x_ref[...], w_ref[...],
                      preferred_element_type=jnp.float32)
        acc = acc + b_ref[...]
        # Per-key outputs written straight from the kernel: no padded fused
        # output round trip through HBM, no post-kernel slice dispatches.
        for (off, size), o_ref in zip(slices, o_refs):
            o_ref[...] = acc[:, off:off + size].astype(o_ref.dtype)

    return kernel


def decoder_matmul_per_key(x, w_fused, b_fused, slices, *, batch_tile=None):
    """x: (B, D), w_fused: (D, O), b_fused: (1, O) -> tuple of (B, size_k)."""
    B, D = x.shape
    O = w_fused.shape[1]
    tb = _pick_batch_tile(B) if batch_tile is None else min(int(batch_tile), B)
    if tb < B:
        assert tb % 8 == 0, "batch tile must be a multiple of 8 sublanes"
    grid = (pl.cdiv(B, tb),)

    out_shapes = tuple(jax.ShapeDtypeStruct((B, size), x.dtype)
                       for _, size in slices)
    out_specs = tuple(pl.BlockSpec((tb, size), lambda i: (i, 0))
                      for _, size in slices)

    return pl.pallas_call(
        _make_decoder_kernel(slices),
        out_shape=out_shapes,
        grid=grid,
        in_specs=[
            # feats stream: one (TB, D) tile per grid step (double-buffered).
            pl.BlockSpec((tb, D), lambda i: (i, 0)),
            # fused weight: constant block index -> VMEM-resident; single
            # buffer (nothing to double-buffer for a constant index).
            pl.BlockSpec((D, O), lambda i: (0, 0),
                         pipeline_mode=pl.Buffered(1)),
            # fused bias: same treatment.
            pl.BlockSpec((1, O), lambda i: (0, 0),
                         pipeline_mode=pl.Buffered(1)),
        ],
        out_specs=out_specs,
        compiler_params=pltpu.CompilerParams(
            dimension_semantics=("parallel",)),
    )(x, w_fused, b_fused)


# ---------------------------------------------------------------------------
# Module wrapper.
# ---------------------------------------------------------------------------
class ObservationDecoderPallas:
    """JAX/Pallas re-implementation of ObservationDecoder's forward pass."""

    def __init__(self, decode_shapes, input_feat_dim, key):
        assert isinstance(decode_shapes, OrderedDict)
        self.obs_shapes = OrderedDict(
            (k, tuple(decode_shapes[k])) for k in decode_shapes)
        self.input_feat_dim = int(input_feat_dim)

        # Per-key parameters (for inspection / reference), stored as
        # (D, out_dim) i.e. transposed vs torch's (out_dim, D) so the hot
        # path is a plain (B, D) @ (D, O) MXU matmul.
        self.params = OrderedDict()
        bound = 1.0 / np.sqrt(self.input_feat_dim)
        for k in self.obs_shapes:
            out_dim = int(np.prod(self.obs_shapes[k]))
            key, wk, bk = jax.random.split(key, 3)
            W = jax.random.uniform(
                wk, (self.input_feat_dim, out_dim),
                dtype=jnp.float32, minval=-bound, maxval=bound)
            b = jax.random.uniform(
                bk, (out_dim,), dtype=jnp.float32, minval=-bound, maxval=bound)
            self.params[k] = (W, b)

        # Fused weight/bias built ONCE here (hoisted out of forward): heads
        # concatenated along the output dim.  No lane padding is needed now
        # that per-key outputs are emitted directly from the kernel.
        self._slices = OrderedDict()
        off = 0
        w_list, b_list = [], []
        for k in self.obs_shapes:
            W, b = self.params[k]
            size = W.shape[1]
            self._slices[k] = (off, size)
            w_list.append(W)
            b_list.append(b)
            off += size
        self.o_total = off
        self.w_fused = jnp.concatenate(w_list, axis=1)              # (D, O)
        self.b_fused = jnp.concatenate(b_list, axis=0).reshape(1, off)
        self._slice_tuple = tuple(self._slices[k] for k in self.obs_shapes)
        # TODO(synk): bf16 w_fused + in-kernel bf16 cast of x once the
        # workload is MXU/VMEM-bound (memory-bound at these shapes).

    def output_shape(self, input_shape=None):
        return {k: list(self.obs_shapes[k]) for k in self.obs_shapes}

    def forward(self, feats, *, batch_tile=None, force_pallas=False):
        # torch Linear broadcasts over leading dims, then reshape(-1, *shape)
        # flattens them; we flatten up front.
        feats2d = feats.reshape(-1, self.input_feat_dim)
        B = feats2d.shape[0]

        if (not force_pallas) and batch_tile is None and B < _MIN_PALLAS_BATCH:
            # Small-batch fallback: at tiny flattened B the kernel dispatch
            # cost dominates by orders of magnitude; let XLA fuse one tiny
            # dot (HIGHEST precision ~ torch f32) + cheap slices instead.
            fused = jnp.dot(feats2d, self.w_fused,
                            precision=jax.lax.Precision.HIGHEST) + self.b_fused
            output = OrderedDict()
            for k, (off, size) in self._slices.items():
                output[k] = fused[:, off:off + size].reshape(
                    -1, *self.obs_shapes[k])
            return output

        outs = decoder_matmul_per_key(
            feats2d, self.w_fused, self.b_fused, self._slice_tuple,
            batch_tile=batch_tile)
        output = OrderedDict()
        for (k, shp), o in zip(self.obs_shapes.items(), outs):
            # reshape of a contiguous (B, prod(shp)) array: pure metadata.
            output[k] = o.reshape(-1, *shp)
        return output


# ---------------------------------------------------------------------------
# Self-test.
# ---------------------------------------------------------------------------
if __name__ == "__main__":
    decode_shapes = OrderedDict([
        ("robot0_eef_pos", (3,)),
        ("actions", (8, 7)),
        ("latent_image", (4, 4, 3)),
    ])
    input_feat_dim = 32

    root = jax.random.PRNGKey(0)
    pkey, x0, x1, x2 = jax.random.split(root, 4)
    decoder = ObservationDecoderPallas(decode_shapes, input_feat_dim, pkey)

    def reference(feats):
        feats2d = np.asarray(feats).reshape(-1, input_feat_dim)
        ref = OrderedDict()
        for k, shp in decode_shapes.items():
            W, b = decoder.params[k]
            ref[k] = (feats2d @ np.asarray(W) + np.asarray(b)).reshape(-1, *shp)
        return ref

    def check(out, feats):
        out = jax.tree_util.tree_map(jax.block_until_ready, out)
        ref = reference(feats)
        B = int(np.asarray(feats).reshape(-1, input_feat_dim).shape[0])
        good = True
        for k, shp in decode_shapes.items():
            if tuple(out[k].shape) != (B,) + tuple(shp):
                good = False
            if not np.allclose(np.asarray(out[k]), ref[k],
                               rtol=1e-4, atol=1e-4):
                good = False
        return good

    ok = True

    # 1) Shipped tiny batch (B=2): exercises the small-batch XLA fallback.
    feats_tiny = jax.random.normal(x0, (2, input_feat_dim), dtype=jnp.float32)
    ok &= check(decoder.forward(feats_tiny), feats_tiny)

    # 2) Pallas path with a forced small tile (64) and B=150: multi-block
    #    grid with a partial last block -> verifies out-of-range row masking
    #    (review's correctness concern about B not divisible by the tile).
    feats_mid = jax.random.normal(x1, (150, input_feat_dim), dtype=jnp.float32)
    ok &= check(decoder.forward(feats_mid, batch_tile=64, force_pallas=True),
                feats_mid)

    # 3) Pallas path with default tiling (B=300 -> tile 152, 2 grid blocks:
    #    the v7x two-TensorCore split; last block partial).
    feats_big = jax.random.normal(x2, (300, input_feat_dim), dtype=jnp.float32)
    ok &= check(decoder.forward(feats_big), feats_big)

    print("KERNEL_OK" if ok else "MISMATCH")
</pallas_src>

<mosaic_0001>
module attributes {stable_mosaic.version = 11 : i64} {
  func.func @kernel(%arg0: i32, %arg1: memref<64x32xf32, #tpu.memory_space<vmem>>, %arg2: memref<32x107xf32, #tpu.memory_space<vmem>>, %arg3: memref<1x107xf32, #tpu.memory_space<vmem>>, %arg4: memref<64x3xf32, #tpu.memory_space<vmem>>, %arg5: memref<64x56xf32, #tpu.memory_space<vmem>>, %arg6: memref<64x48xf32, #tpu.memory_space<vmem>>) attributes {dimension_semantics = [#tpu.dimension_semantics<parallel>], iteration_bounds = array<i64: 3>, scalar_prefetch = 0 : i64, scratch_operands = 0 : i64, tpu.core_type = #tpu.core_type<tc>, window_params = [{transform_indices = @transform_0, window_bounds = array<i64: 64, 32>}, {pipeline_mode = #tpu.pipeline_mode<synchronous>, transform_indices = @transform_1, window_bounds = array<i64: 32, 107>}, {pipeline_mode = #tpu.pipeline_mode<synchronous>, transform_indices = @transform_2, window_bounds = array<i64: 1, 107>}, {transform_indices = @transform_3, window_bounds = array<i64: 64, 3>}, {transform_indices = @transform_4, window_bounds = array<i64: 64, 56>}, {transform_indices = @transform_5, window_bounds = array<i64: 64, 48>}]} {
    %c0 = arith.constant 0 : index
    %c0_0 = arith.constant 0 : index
    %0 = vector.load %arg1[%c0, %c0_0] : memref<64x32xf32, #tpu.memory_space<vmem>>, vector<64x32xf32>
    %c0_1 = arith.constant 0 : index
    %c0_2 = arith.constant 0 : index
    %1 = vector.load %arg2[%c0_1, %c0_2] : memref<32x107xf32, #tpu.memory_space<vmem>>, vector<32x107xf32>
    %cst = arith.constant dense<0.000000e+00> : vector<64x107xf32>
    %2 = tpu.matmul %0, %1, %cst {dimension_numbers = #tpu.dot_dimension_numbers<[1], [0], [0], [1], [0, 0, 1, 1], [], []>} : vector<64x32xf32>, vector<32x107xf32>, vector<64x107xf32> -> vector<64x107xf32>
    %c0_3 = arith.constant 0 : index
    %c0_4 = arith.constant 0 : index
    %3 = vector.load %arg3[%c0_3, %c0_4] : memref<1x107xf32, #tpu.memory_space<vmem>>, vector<1x107xf32>
    %4 = vector.broadcast %3 : vector<1x107xf32> to vector<64x107xf32>
    %5 = arith.addf %2, %4 : vector<64x107xf32>
    %6 = vector.extract_strided_slice %5 {offsets = [0, 0], sizes = [64, 3], strides = [1, 1]} : vector<64x107xf32> to vector<64x3xf32>
    %c0_5 = arith.constant 0 : index
    %c0_6 = arith.constant 0 : index
    %7 = vector.load %arg4[%c0_5, %c0_6] : memref<64x3xf32, #tpu.memory_space<vmem>>, vector<64x3xf32>
    tpu.vector_store %arg4[%c0_5, %c0_6], %6 {strides = array<i32>} : memref<64x3xf32, #tpu.memory_space<vmem>>, vector<64x3xf32>,
    %8 = vector.extract_strided_slice %5 {offsets = [0, 3], sizes = [64, 56], strides = [1, 1]} : vector<64x107xf32> to vector<64x56xf32>
    %c0_7 = arith.constant 0 : index
    %c0_8 = arith.constant 0 : index
    %9 = vector.load %arg5[%c0_7, %c0_8] : memref<64x56xf32, #tpu.memory_space<vmem>>, vector<64x56xf32>
    tpu.vector_store %arg5[%c0_7, %c0_8], %8 {strides = array<i32>} : memref<64x56xf32, #tpu.memory_space<vmem>>, vector<64x56xf32>,
    %10 = vector.extract_strided_slice %5 {offsets = [0, 59], sizes = [64, 48], strides = [1, 1]} : vector<64x107xf32> to vector<64x48xf32>
    %c0_9 = arith.constant 0 : index
    %c0_10 = arith.constant 0 : index
    %11 = vector.load %arg6[%c0_9, %c0_10] : memref<64x48xf32, #tpu.memory_space<vmem>>, vector<64x48xf32>
    tpu.vector_store %arg6[%c0_9, %c0_10], %10 {strides = array<i32>} : memref<64x48xf32, #tpu.memory_space<vmem>>, vector<64x48xf32>,
    return
  }
  func.func @transform_0(%arg0: i32) -> (i32, i32) {
    %c0_i32 = arith.constant 0 : i32
    %c0_i32_0 = arith.constant 0 : i32
    return %arg0, %c0_i32 : i32, i32
  }
  func.func @transform_1(%arg0: i32) -> (i32, i32) {
    %c0_i32 = arith.constant 0 : i32
    %c0_i32_0 = arith.constant 0 : i32
    %c0_i32_1 = arith.constant 0 : i32
    return %c0_i32, %c0_i32_0 : i32, i32
  }
  func.func @transform_2(%arg0: i32) -> (i32, i32) {
    %c0_i32 = arith.constant 0 : i32
    %c0_i32_0 = arith.constant 0 : i32
    %c0_i32_1 = arith.constant 0 : i32
    return %c0_i32, %c0_i32_0 : i32, i32
  }
  func.func @transform_3(%arg0: i32) -> (i32, i32) {
    %c0_i32 = arith.constant 0 : i32
    %c0_i32_0 = arith.constant 0 : i32
    return %arg0, %c0_i32 : i32, i32
  }
  func.func @transform_4(%arg0: i32) -> (i32, i32) {
    %c0_i32 = arith.constant 0 : i32
    %c0_i32_0 = arith.constant 0 : i32
    return %arg0, %c0_i32 : i32, i32
  }
  func.func @transform_5(%arg0: i32) -> (i32, i32) {
    %c0_i32 = arith.constant 0 : i32
    %c0_i32_0 = arith.constant 0 : i32
    return %arg0, %c0_i32 : i32, i32
  }
}

</mosaic_0001>

<llo_original>
// kernel: tpu_custom_call.1
$region0: #{tpu_custom_call.1}
  #allocation0 [shape = 'u32[]', space=smem, size = 0x4, offset = 0x4, fixed_abs, tag = 'smem constant byte address 0x4 - core index']
  #allocation1 [shape = 'u32[72,128]{1,0:T(1,128)}', space=vmem, size = 0x9000, scoped, tag = 'internal scratch']
  %s0 = inlined_call_operand.vmem [shape: f32[150,32], index: 0, kind: input, shape index: {}]
  %s1 = inlined_call_operand.vmem [shape: f32[32,107], index: 1, kind: input, shape index: {}]
  %s2 = inlined_call_operand.vmem [shape: f32[1,107], index: 2, kind: input, shape index: {}]
  %s3 = inlined_call_operand.vmem [shape: f32[150,3], index: 3, kind: output, shape index: {0}]
  %s4 = inlined_call_operand.vmem [shape: f32[150,56], index: 4, kind: output, shape index: {1}]
  %s5 = inlined_call_operand.vmem [shape: f32[150,48], index: 5, kind: output, shape index: {2}]
  %6 = xla_tuple %s3, %s4, %s5
  %s7 = sld [smem:[#allocation0]]
  $region205: #{tpu_custom_call.1} parent=0
    _
  %s9 = ssub.s32 1, %s7
  %s10 = scalar_select 0, %s9, %s7
  $region1: #{tpu_custom_call.1} parent=0
    #allocation2 [shape = 'u8[65536]{0}', space=vmem, size = 0x10000, scoped, tag = 'output window, operand 0']
    #allocation3 [shape = 'u8[65536]{0}', space=vmem, size = 0x10000, scoped, tag = 'output window, operand 1']
    #allocation4 [shape = 'u8[65536]{0}', space=vmem, size = 0x10000, scoped, tag = 'output window, operand 2']
    loop: start=0, step=1, limit=5
    $region2: #{tpu_custom_call.1} parent=1 // loop_pre_header
      _
    $region3: #{tpu_custom_call.1} parent=1 // loop_header
      %s12 = sphi 0, %s16
      %p13 = scmp.ge.s32.totalorder %s12, 5
      %s22 = sphi 0, %s24
      %s25 = sphi 0, %s22
      %s26 = sphi 0, %s25
      %s42 = sphi 0, %s26
      %s46 = sphi 0, %s46
      %s48 = sphi 0, %s46
      %s49 = sphi 0, %s48
      %s63 = sphi 0, %s49
      %s67 = sphi 0, %s67
      %s69 = sphi 0, %s67
      %s70 = sphi 0, %s69
      %s84 = sphi 0, %s70
      %s90 = sphi 0, %s92
      %s93 = sphi 0, %s90
      %s94 = sphi 0, %s93
      %s110 = sphi 0, %s94
      %s116 = sphi 0, %s118
      %s119 = sphi 0, %s116
      %s120 = sphi 0, %s119
      %s136 = sphi 0, %s120
      %s142 = sphi 0, %s144
      %s145 = sphi 0, %s142
      %s146 = sphi 0, %s145
      %s162 = sphi 0, %s146
    $region4: #{tpu_custom_call.1} parent=1 // loop_header_branch
      %15 = sbr.rel (%p13) target = $region8
    $region5: #{tpu_custom_call.1} parent=1 // loop_body
      %s17 = ssub.s32 %s12, 1
      %s18 = ssub.s32 %s12, 2
      %s19 = sadd.s32 %s12, 1
      %s20 = ssub.s32 %s12, %s19
      %p21 = scmp.eq.s32.totalorder %s20, 0
      %s23 = sadd.s32 %s22, 1
      %s24 = scalar_select %p21, %s22, %s23
      %p27 = pneg %p21
      %p28 = scmp.eq.s32.totalorder %s12, 2
      %p29 = por %p27, %p28
      %p30 = scmp.ne.s32.totalorder %s22, %s25
      %p31 = scmp.eq.s32.totalorder %s12, 0
      %p32 = por %p30, %p31
      %p33 = scmp.ne.s32.totalorder %s22, %s25
      %p34 = scmp.eq.s32.totalorder %s17, 2
      %p35 = por %p33, %p34
      %p36 = scmp.ne.s32.totalorder %s25, %s26
      %p37 = scmp.eq.s32.totalorder %s17, 0
      %p38 = por %p36, %p37
      %p39 = scmp.ne.s32.totalorder %s25, %s26
      %p40 = scmp.eq.s32.totalorder %s18, 2
      %p41 = por %p39, %p40
      %p43 = scmp.ne.s32.totalorder %s26, %s42
      %p44 = scmp.eq.s32.totalorder %s18, 0
      %p45 = por %p43, %p44
      %s47 = sadd.s32 %s46, 1
      %p50 = scmp.eq.s32.totalorder %s12, 2
      %p51 = scmp.ne.s32.totalorder %s46, %s48
      %p52 = scmp.eq.s32.totalorder %s12, 0
      %p53 = por %p51, %p52
      %p54 = scmp.ne.s32.totalorder %s46, %s48
      %p55 = scmp.eq.s32.totalorder %s17, 2
      %p56 = por %p54, %p55
      %p57 = scmp.ne.s32.totalorder %s48, %s49
      %p58 = scmp.eq.s32.totalorder %s17, 0
      %p59 = por %p57, %p58
      %p60 = scmp.ne.s32.totalorder %s48, %s49
      %p61 = scmp.eq.s32.totalorder %s18, 2
      %p62 = por %p60, %p61
      %p64 = scmp.ne.s32.totalorder %s49, %s63
      %p65 = scmp.eq.s32.totalorder %s18, 0
      %p66 = por %p64, %p65
      %s68 = sadd.s32 %s67, 1
      %p71 = scmp.eq.s32.totalorder %s12, 2
      %p72 = scmp.ne.s32.totalorder %s67, %s69
      %p73 = scmp.eq.s32.totalorder %s12, 0
      %p74 = por %p72, %p73
      %p75 = scmp.ne.s32.totalorder %s67, %s69
      %p76 = scmp.eq.s32.totalorder %s17, 2
      %p77 = por %p75, %p76
      %p78 = scmp.ne.s32.totalorder %s69, %s70
      %p79 = scmp.eq.s32.totalorder %s17, 0
      %p80 = por %p78, %p79
      %p81 = scmp.ne.s32.totalorder %s69, %s70
      %p82 = scmp.eq.s32.totalorder %s18, 2
      %p83 = por %p81, %p82
      %p85 = scmp.ne.s32.totalorder %s70, %s84
      %p86 = scmp.eq.s32.totalorder %s18, 0
      %p87 = por %p85, %p86
      %s88 = ssub.s32 %s12, %s19
      %p89 = scmp.eq.s32.totalorder %s88, 0
      %s91 = sadd.s32 %s90, 1
      %s92 = scalar_select %p89, %s90, %s91
      %p95 = pneg %p89
      %p96 = scmp.eq.s32.totalorder %s12, 2
      %p97 = por %p95, %p96
      %p98 = scmp.ne.s32.totalorder %s90, %s93
      %p99 = scmp.eq.s32.totalorder %s12, 0
      %p100 = por %p98, %p99
      %p101 = scmp.ne.s32.totalorder %s90, %s93
      %p102 = scmp.eq.s32.totalorder %s17, 2
      %p103 = por %p101, %p102
      %p104 = scmp.ne.s32.totalorder %s93, %s94
      %p105 = scmp.eq.s32.totalorder %s17, 0
      %p106 = por %p104, %p105
      %p107 = scmp.ne.s32.totalorder %s93, %s94
      %p108 = scmp.eq.s32.totalorder %s18, 2
      %p109 = por %p107, %p108
      %p111 = scmp.ne.s32.totalorder %s94, %s110
      %p112 = scmp.eq.s32.totalorder %s18, 0
      %p113 = por %p111, %p112
      %s114 = ssub.s32 %s12, %s19
      %p115 = scmp.eq.s32.totalorder %s114, 0
      %s117 = sadd.s32 %s116, 1
      %s118 = scalar_select %p115, %s116, %s117
      %p121 = pneg %p115
      %p122 = scmp.eq.s32.totalorder %s12, 2
      %p123 = por %p121, %p122
      %p124 = scmp.ne.s32.totalorder %s116, %s119
      %p125 = scmp.eq.s32.totalorder %s12, 0
      %p126 = por %p124, %p125
      %p127 = scmp.ne.s32.totalorder %s116, %s119
      %p128 = scmp.eq.s32.totalorder %s17, 2
      %p129 = por %p127, %p128
      %p130 = scmp.ne.s32.totalorder %s119, %s120
      %p131 = scmp.eq.s32.totalorder %s17, 0
      %p132 = por %p130, %p131
      %p133 = scmp.ne.s32.totalorder %s119, %s120
      %p134 = scmp.eq.s32.totalorder %s18, 2
      %p135 = por %p133, %p134
      %p137 = scmp.ne.s32.totalorder %s120, %s136
      %p138 = scmp.eq.s32.totalorder %s18, 0
      %p139 = por %p137, %p138
      %s140 = ssub.s32 %s12, %s19
      %p141 = scmp.eq.s32.totalorder %s140, 0
      %s143 = sadd.s32 %s142, 1
      %s144 = scalar_select %p141, %s142, %s143
      %p147 = pneg %p141
      %p148 = scmp.eq.s32.totalorder %s12, 2
      %p149 = por %p147, %p148
      %p150 = scmp.ne.s32.totalorder %s142, %s145
      %p151 = scmp.eq.s32.totalorder %s12, 0
      %p152 = por %p150, %p151
      %p153 = scmp.ne.s32.totalorder %s142, %s145
      %p154 = scmp.eq.s32.totalorder %s17, 2
      %p155 = por %p153, %p154
      %p156 = scmp.ne.s32.totalorder %s145, %s146
      %p157 = scmp.eq.s32.totalorder %s17, 0
      %p158 = por %p156, %p157
      %p159 = scmp.ne.s32.totalorder %s145, %s146
      %p160 = scmp.eq.s32.totalorder %s18, 2
      %p161 = por %p159, %p160
      %p163 = scmp.ne.s32.totalorder %s146, %s162
      %p164 = scmp.eq.s32.totalorder %s18, 0
      %p165 = por %p163, %p164
      %p166 = scmp.le.s32.totalorder 1, %s12
      %p167 = scmp.lt.s32.totalorder %s12, 4
      %p168 = pnand %p166, %p167
      %p169 = pneg %p168
      // Predicated region
      $region9: #{tpu_custom_call.1} parent=5 // pred_check
        _
      $region10: #{tpu_custom_call.1} parent=5 // pred_check_branch
        %171 = sbr.rel (%p168) target = $region12
      $region11: #{tpu_custom_call.1} parent=5 // pred_region
        %s172 = ssub.s32 %s12, 1
        // Predicated region
        $region13: #{tpu_custom_call.1} parent=11 // pred_check
          %p173 = pneg %p59
        $region14: #{tpu_custom_call.1} parent=11 // pred_check_branch
          %175 = sbr.rel (%p173) target = $region16
        $region15: #{tpu_custom_call.1} parent=11 // pred_region
          _
        $region16: #{tpu_custom_call.1} parent=11 // pred_fallthru
          _
        // Predicated region
        $region17: #{tpu_custom_call.1} parent=11 // pred_check
          %p176 = pneg %p80
        $region18: #{tpu_custom_call.1} parent=11 // pred_check_branch
          %178 = sbr.rel (%p176) target = $region20
        $region19: #{tpu_custom_call.1} parent=11 // pred_region
          _
        $region20: #{tpu_custom_call.1} parent=11 // pred_fallthru
          _
      $region12: #{tpu_custom_call.1} parent=5 // pred_fallthru
        _
      %p179 = scmp.lt.s32.totalorder %s12, 3
      // Predicated region
      $region21: #{tpu_custom_call.1} parent=5 // pred_check
        %p180 = pneg %p179
      $region22: #{tpu_custom_call.1} parent=5 // pred_check_branch
        %182 = sbr.rel (%p180) target = $region24
      $region23: #{tpu_custom_call.1} parent=5 // pred_region
        // Predicated region
        $region25: #{tpu_custom_call.1} parent=23 // pred_check
          %p183 = pneg %p32
        $region26: #{tpu_custom_call.1} parent=23 // pred_check_branch
          %185 = sbr.rel (%p183) target = $region28
        $region27: #{tpu_custom_call.1} parent=23 // pred_region
          %s186 = smul.u32 8, %s12
          %s187 = ssub.s32 19, %s186
          %p188 = scmp.lt.s32.totalorder %s187, 8
          %s189 = scalar_select %p188, %s187, 8
          %s190 = smul.u32 8, %s189
          %p191 = scmp.lt.s32.totalorder %s186, 18
          %s192 = scalar_select %p191, %s186, 18
          %s193 = smul.addr %s192, 8
          %s194 = scalar_lea.vmem %s0, %s193
          %s195 = smul.u32 8, %s12
          %s196 = ssub.s32 19, %s195
          %p197 = scmp.lt.s32.totalorder %s196, 8
          %s198 = scalar_select %p197, %s196, 8
          %s199 = smul.u32 8, %s198
        $region28: #{tpu_custom_call.1} parent=23 // pred_fallthru
          _
      $region24: #{tpu_custom_call.1} parent=5 // pred_fallthru
        _
      %p200 = scmp.le.s32.totalorder 1, %s12
      %p201 = scmp.lt.s32.totalorder %s12, 4
      %p202 = pnand %p200, %p201
      %p203 = pneg %p202
      // Predicated region
      $region29: #{tpu_custom_call.1} parent=5 // pred_check
        _
      $region30: #{tpu_custom_call.1} parent=5 // pred_check_branch
        %205 = sbr.rel (%p202) target = $region32
      $region31: #{tpu_custom_call.1} parent=5 // pred_region
        %s206 = ssub.s32 %s12, 1
        %s207 = smul.u32 8, %s17
        %s208 = ssub.s32 19, %s207
        %p209 = scmp.lt.s32.totalorder %s208, 8
        %s210 = scalar_select %p209, %s208, 8
        %s211 = smul.u32 8, %s210
        %p212 = scmp.lt.s32.totalorder %s207, 18
        %s213 = scalar_select %p212, %s207, 18
        %s214 = smul.addr %s213, 8
        %s215 = scalar_lea.vmem %s0, %s214
        %p216 = pneg %p38
        %p217 = pneg %p35
        %p218 = pneg %p59
        %p219 = pneg %p56
        %p220 = pneg %p80
        %p221 = pneg %p77
        %p222 = pneg %p106
        %p223 = pneg %p103
        %s224 = sand.u32 %s93, 1
        %s225 = sand.u32 %s93, 1
        %s226 = smul.addr %s225, 64
        %s227 = scalar_lea.vmem [#allocation2], %s226
        %p228 = pneg %p132
        %p229 = pneg %p129
        %s230 = sand.u32 %s119, 1
        %s231 = sand.u32 %s119, 1
        %s232 = smul.addr %s231, 64
        %s233 = scalar_lea.vmem [#allocation3], %s232
        %p234 = pneg %p158
        %p235 = pneg %p155
        %s236 = sand.u32 %s145, 1
        %s237 = sand.u32 %s145, 1
        %s238 = smul.addr %s237, 64
        %s239 = scalar_lea.vmem [#allocation4], %s238
        %s240 = smul.u32 8, %s17
        %s241 = ssub.s32 19, %s240
        %p242 = scmp.lt.s32.totalorder %s241, 8
        %s243 = scalar_select %p242, %s241, 8
        %s244 = smul.u32 8, %s243
        %p245 = scmp.lt.s32.totalorder %s240, 18
        %s246 = scalar_select %p245, %s240, 18
        %s247 = smul.addr %s246, 8
        %s248 = scalar_lea.vmem %s0, %s247
        %s249 = smul.u32 8, %s17
        %s250 = ssub.s32 19, %s249
        %p251 = scmp.lt.s32.totalorder %s250, 8
        %s252 = scalar_select %p251, %s250, 8
        %s253 = smul.u32 8, %s252
        %s254 = smul.u32 8, %s17
        %s255 = ssub.s32 19, %s254
        %p256 = scmp.lt.s32.totalorder %s255, 8
        %s257 = scalar_select %p256, %s255, 8
        %s258 = smul.u32 8, %s257
        %s259 = smul.u32 8, %s17
        %s260 = ssub.s32 19, %s259
        %p261 = scmp.lt.s32.totalorder %s260, 8
        %s262 = scalar_select %p261, %s260, 8
        %s263 = smul.u32 8, %s262
        %s264 = smul.u32 8, %s17
        %s265 = ssub.s32 19, %s264
        %p266 = scmp.lt.s32.totalorder %s265, 8
        %s267 = scalar_select %p266, %s265, 8
        %s268 = smul.u32 8, %s267
        %v269 = vld [vmem:[%s248] sm:$0xff]
        %v270 = vld [vmem:[%s248 + $0x8] sm:$0xff]
        %v271 = vld [vmem:[%s248 + $0x10] sm:$0xff]
        %v272 = vld [vmem:[%s248 + $0x18] sm:$0xff]
        %v273 = vld [vmem:[%s248 + $0x20] sm:$0xff]
        %v274 = vld [vmem:[%s248 + $0x28] sm:$0xff]
        %v275 = vld [vmem:[%s248 + $0x30] sm:$0xff]
        %v276 = vld [vmem:[%s248 + $0x38] sm:$0xff]
        %v277 = vld [vmem:[%s1] sm:$0xff]
        %v278 = vld [vmem:[%s1 + $0x8] sm:$0xff]
        %v279 = vld [vmem:[%s1 + $0x10] sm:$0xff]
        %v280 = vld [vmem:[%s1 + $0x18] sm:$0xff]
        %v281 = vld [vmem:[%s2] sm:$0x1]
        %v283 = vperm.slane %v281, 0
        %vm285 = vcmask 261120
        %v287 = vsel %vm285, %v269, 0
        %v290 = vsel %vm285, %v270, 0
        %v293 = vsel %vm285, %v271, 0
        %v296 = vsel %vm285, %v272, 0
        %v299 = vsel %vm285, %v273, 0
        %v302 = vsel %vm285, %v274, 0
        %v305 = vsel %vm285, %v275, 0
        %v308 = vsel %vm285, %v276, 0
        %310 = vmatpush.msra.mxu0 0.0
        %311 = vmatpush.msra.mxu0 0.0
        %312 = vmatpush.msra.mxu0 0.0
        %313 = vmatpush.msra.mxu0 0.0
        %314 = vmatpush.msra.mxu0 0.0
        %315 = vmatpush.msra.mxu0 0.0
        %316 = vmatpush.msra.mxu0 0.0
        %317 = vmatpush.msra.mxu0 0.0
        %318 = vmatpush.msra.mxu0 0.0
        %319 = vmatpush.msra.mxu0 0.0
        %320 = vmatpush.msra.mxu0 0.0
        %321 = vmatpush.msra.mxu0 0.0
        %322 = vmatpush.msra.mxu0 %v280
        %323 = vmatpush.msra.mxu0 %v279
        %324 = vmatpush.msra.mxu0 %v278
        %325 = vmatpush.msra.mxu0 %v277
        %326 = vmatmul.f32.gmra.mxu0 %v287
        %v327 = vpop.f32.mrf.mxu0
        %v328 = vadd.f32 %v283, %v327
        %329 = vmatmul.f32.gmra.mxu0 %v290
        %v330 = vpop.f32.mrf.mxu0
        %v331 = vadd.f32 %v283, %v330
        %332 = vmatmul.f32.gmra.mxu0 %v293
        %v333 = vpop.f32.mrf.mxu0
        %v334 = vadd.f32 %v283, %v333
        %335 = vmatmul.f32.gmra.mxu0 %v296
        %v336 = vpop.f32.mrf.mxu0
        %v337 = vadd.f32 %v283, %v336
        %338 = vmatmul.f32.gmra.mxu0 %v299
        %v339 = vpop.f32.mrf.mxu0
        %v340 = vadd.f32 %v283, %v339
        %341 = vmatmul.f32.gmra.mxu0 %v302
        %v342 = vpop.f32.mrf.mxu0
        %v343 = vadd.f32 %v283, %v342
        %344 = vmatmul.f32.gmra.mxu0 %v305
        %v345 = vpop.f32.mrf.mxu0
        %v346 = vadd.f32 %v283, %v345
        %347 = vmatmul.f32.gmra.mxu0 %v308
        %v348 = vpop.f32.mrf.mxu0
        %v349 = vadd.f32 %v283, %v348
        %350 = vdwg.mxu0
        %vm351 = vcmask 23552
        %352 = vst.msk [vmem:[%s227] sm:$0xff] %vm351, %v328
        %353 = vst.msk [vmem:[%s227 + $0x8] sm:$0xff] %vm351, %v331
        %354 = vst.msk [vmem:[%s227 + $0x10] sm:$0xff] %vm351, %v334
        %355 = vst.msk [vmem:[%s227 + $0x18] sm:$0xff] %vm351, %v337
        %356 = vst.msk [vmem:[%s227 + $0x20] sm:$0xff] %vm351, %v340
        %357 = vst.msk [vmem:[%s227 + $0x28] sm:$0xff] %vm351, %v343
        %358 = vst.msk [vmem:[%s227 + $0x30] sm:$0xff] %vm351, %v346
        %359 = vst.msk [vmem:[%s227 + $0x38] sm:$0xff] %vm351, %v349
        %368 = vrot.lane.b32.xlu0 %v328, 125
        %v369 = vpop.permute.xlu0 %368
        %370 = vrot.lane.b32.xlu0 %v331, 125
        %v371 = vpop.permute.xlu0 %370
        %372 = vrot.lane.b32.xlu0 %v334, 125
        %v373 = vpop.permute.xlu0 %372
        %374 = vrot.lane.b32.xlu0 %v337, 125
        %v375 = vpop.permute.xlu0 %374
        %376 = vrot.lane.b32.xlu0 %v340, 125
        %v377 = vpop.permute.xlu0 %376
        %378 = vrot.lane.b32.xlu0 %v343, 125
        %v379 = vpop.permute.xlu0 %378
        %380 = vrot.lane.b32.xlu0 %v346, 125
        %v381 = vpop.permute.xlu0 %380
        %382 = vrot.lane.b32.xlu0 %v349, 125
        %v383 = vpop.permute.xlu0 %382
        %vm392 = vcmask 457728
        %393 = vst.msk [vmem:[%s233] sm:$0xff] %vm392, %v369
        %394 = vst.msk [vmem:[%s233 + $0x8] sm:$0xff] %vm392, %v371
        %395 = vst.msk [vmem:[%s233 + $0x10] sm:$0xff] %vm392, %v373
        %396 = vst.msk [vmem:[%s233 + $0x18] sm:$0xff] %vm392, %v375
        %397 = vst.msk [vmem:[%s233 + $0x20] sm:$0xff] %vm392, %v377
        %398 = vst.msk [vmem:[%s233 + $0x28] sm:$0xff] %vm392, %v379
        %399 = vst.msk [vmem:[%s233 + $0x30] sm:$0xff] %vm392, %v381
        %400 = vst.msk [vmem:[%s233 + $0x38] sm:$0xff] %vm392, %v383
        %401 = vrot.lane.b32.xlu0 %v328, 69
        %v402 = vpop.permute.xlu0 %401
        %403 = vrot.lane.b32.xlu0 %v331, 69
        %v404 = vpop.permute.xlu0 %403
        %405 = vrot.lane.b32.xlu0 %v334, 69
        %v406 = vpop.permute.xlu0 %405
        %407 = vrot.lane.b32.xlu0 %v337, 69
        %v408 = vpop.permute.xlu0 %407
        %409 = vrot.lane.b32.xlu0 %v340, 69
        %v410 = vpop.permute.xlu0 %409
        %411 = vrot.lane.b32.xlu0 %v343, 69
        %v412 = vpop.permute.xlu0 %411
        %413 = vrot.lane.b32.xlu0 %v346, 69
        %v414 = vpop.permute.xlu0 %413
        %415 = vrot.lane.b32.xlu0 %v349, 69
        %v416 = vpop.permute.xlu0 %415
        %vm425 = vcmask 392192
        %426 = vst.msk [vmem:[%s239] sm:$0xff] %vm425, %v402
        %427 = vst.msk [vmem:[%s239 + $0x8] sm:$0xff] %vm425, %v404
        %428 = vst.msk [vmem:[%s239 + $0x10] sm:$0xff] %vm425, %v406
        %429 = vst.msk [vmem:[%s239 + $0x18] sm:$0xff] %vm425, %v408
        %430 = vst.msk [vmem:[%s239 + $0x20] sm:$0xff] %vm425, %v410
        %431 = vst.msk [vmem:[%s239 + $0x28] sm:$0xff] %vm425, %v412
        %432 = vst.msk [vmem:[%s239 + $0x30] sm:$0xff] %vm425, %v414
        %433 = vst.msk [vmem:[%s239 + $0x38] sm:$0xff] %vm425, %v416
        %s434 = sand.u32 %s93, 1
        %s435 = sand.u32 %s93, 1
        %s436 = smul.addr %s435, 64
        %s437 = scalar_lea.vmem [#allocation2], %s436
        %s438 = sand.u32 %s119, 1
        %s439 = sand.u32 %s119, 1
        %s440 = smul.addr %s439, 64
        %s441 = scalar_lea.vmem [#allocation3], %s440
        %s442 = sand.u32 %s145, 1
        %s443 = sand.u32 %s145, 1
        %s444 = smul.addr %s443, 64
        %s445 = scalar_lea.vmem [#allocation4], %s444
        // Predicated region
        $region33: #{tpu_custom_call.1} parent=31 // pred_check
          %p446 = pneg %p103
        $region34: #{tpu_custom_call.1} parent=31 // pred_check_branch
          %448 = sbr.rel (%p446) target = $region36
        $region35: #{tpu_custom_call.1} parent=31 // pred_region
          %s449 = smul.u32 8, %s17
          %s450 = ssub.s32 19, %s449
          %p451 = scmp.lt.s32.totalorder %s450, 8
          %s452 = scalar_select %p451, %s450, 8
          %s453 = smul.u32 8, %s452
          %p454 = scmp.ne.s32.totalorder 0, %s453
          %s455 = smul.addr %s449, 8
          %s456 = scalar_lea.vmem %s3, %s455
          // Predicated region
          $region37: #{tpu_custom_call.1} parent=35 // pred_check
            %p457 = pneg %p454
          $region38: #{tpu_custom_call.1} parent=35 // pred_check_branch
            %459 = sbr.rel (%p457) target = $region40
          $region39: #{tpu_custom_call.1} parent=35 // pred_region
            // Predicated region
            $region41: #{tpu_custom_call.1} parent=39 // pred_check
              _
            $region42: #{tpu_custom_call.1} parent=39 // pred_check_branch
              %461 = sbr.rel (0) target = $region44
            $region43: #{tpu_custom_call.1} parent=39 // pred_region
              // Predicated region
              $region63: #{tpu_custom_call.1} parent=43 // pred_check
                _
              $region64: #{tpu_custom_call.1} parent=43 // pred_check_branch
                %525 = sbr.rel (0) target = $region66
              $region65: #{tpu_custom_call.1} parent=43 // pred_region
                %s526 = sshrl.u32 %s452, 3
                // While loop
                $region67: #{tpu_custom_call.1} parent=65 // loop_pre_header
                  _
                $region68: #{tpu_custom_call.1} parent=65 // loop_header
                  %s528 = sphi 0, %s530
                  %p529 = scmp.ge.s32.totalorder %s528, %s526
                  %s533 = sphi 0, %s554
                  %s534 = sphi %s437, %s557
                  %s535 = sphi %s456, %s558
                $region69: #{tpu_custom_call.1} parent=65 // loop_header_branch
                  %532 = sbr.rel (%p529) target = $region73
                $region70: #{tpu_custom_call.1} parent=65 // loop_body
                  %v536 = vld [vmem:[%s534] sm:$0xff]
                  %537 = vst [vmem:[%s535] sm:$0xff] %v536
                  %v538 = vld [vmem:[%s534 + $0x8] sm:$0xff]
                  %539 = vst [vmem:[%s535 + $0x8] sm:$0xff] %v538
                  %v540 = vld [vmem:[%s534 + $0x10] sm:$0xff]
                  %541 = vst [vmem:[%s535 + $0x10] sm:$0xff] %v540
                  %v542 = vld [vmem:[%s534 + $0x18] sm:$0xff]
                  %543 = vst [vmem:[%s535 + $0x18] sm:$0xff] %v542
                  %v544 = vld [vmem:[%s534 + $0x20] sm:$0xff]
                  %545 = vst [vmem:[%s535 + $0x20] sm:$0xff] %v544
                  %v546 = vld [vmem:[%s534 + $0x28] sm:$0xff]
                  %547 = vst [vmem:[%s535 + $0x28] sm:$0xff] %v546
                  %v548 = vld [vmem:[%s534 + $0x30] sm:$0xff]
                  %549 = vst [vmem:[%s535 + $0x30] sm:$0xff] %v548
                  %v550 = vld [vmem:[%s534 + $0x38] sm:$0xff]
                  %551 = vst [vmem:[%s535 + $0x38] sm:$0xff] %v550
                  %s552 = sadd.s32 1, %s533
                  %p553 = scmp.ge.s32.totalorder %s552, %s526
                  %s554 = scalar_select %p553, 0, %s552
                  %s555 = smul.u32 %s554, 64
                  %s556 = smul.u32 %s554, 64
                  %s557 = scalar_lea.vmem %s437, %s555 [#allocation2]
                  %s558 = scalar_lea.vmem %s456, %s556
                $region71: #{tpu_custom_call.1} parent=65 // loop_footer
                  %s530 = sadd.s32 %s528, 1
                $region72: #{tpu_custom_call.1} parent=65 // loop_footer_branch
                  %527 = sbr.rel target = $region68
                $region73: #{tpu_custom_call.1} parent=65 // loop_exit
                  _
                %s559 = sshrl.u32 %s452, 3
                %s560 = sand.u32 %s452, 7
                %s561 = smul.u32 %s559, 8
                %s562 = smul.u32 8, %s561
                %s563 = scalar_lea.vmem %s437, %s562 [#allocation2]
                %s564 = smul.u32 8, %s561
                %s565 = scalar_lea.vmem %s456, %s564
                // While loop
                $region74: #{tpu_custom_call.1} parent=65 // loop_pre_header
                  _
                $region75: #{tpu_custom_call.1} parent=65 // loop_header
                  %s567 = sphi 0, %s569
                  %p568 = scmp.ge.s32.totalorder %s567, %s560
                  %s572 = sphi 0, %s579
                  %s573 = sphi %s563, %s582
                  %s574 = sphi %s565, %s583
                $region76: #{tpu_custom_call.1} parent=65 // loop_header_branch
                  %571 = sbr.rel (%p568) target = $region80
                $region77: #{tpu_custom_call.1} parent=65 // loop_body
                  %v575 = vld [vmem:[%s573] sm:$0xff]
                  %576 = vst [vmem:[%s574] sm:$0xff] %v575
                  %s577 = sadd.s32 1, %s572
                  %p578 = scmp.ge.s32.totalorder %s577, %s560
                  %s579 = scalar_select %p578, 0, %s577
                  %s580 = smul.u32 %s579, 8
                  %s581 = smul.u32 %s579, 8
                  %s582 = scalar_lea.vmem %s563, %s580 [#allocation2]
                  %s583 = scalar_lea.vmem %s565, %s581
                $region78: #{tpu_custom_call.1} parent=65 // loop_footer
                  %s569 = sadd.s32 %s567, 1
                $region79: #{tpu_custom_call.1} parent=65 // loop_footer_branch
                  %566 = sbr.rel target = $region75
                $region80: #{tpu_custom_call.1} parent=65 // loop_exit
                  _
              $region66: #{tpu_custom_call.1} parent=43 // pred_fallthru
                _
              // Predicated region
              $region81: #{tpu_custom_call.1} parent=43 // pred_check
                _
              $region82: #{tpu_custom_call.1} parent=43 // pred_check_branch
                %585 = sbr.rel target = $region84
              $region83: #{tpu_custom_call.1} parent=43 // pred_region
                _
              $region84: #{tpu_custom_call.1} parent=43 // pred_fallthru
                _
            $region44: #{tpu_custom_call.1} parent=39 // pred_fallthru
              _
            // Predicated region
            $region45: #{tpu_custom_call.1} parent=39 // pred_check
              _
            $region46: #{tpu_custom_call.1} parent=39 // pred_check_branch
              %463 = sbr.rel target = $region48
            $region47: #{tpu_custom_call.1} parent=39 // pred_region
              %s465 = ssub.s32 256, 1
              %s466 = sshrl.u32 %s452, 3
              // While loop
              $region49: #{tpu_custom_call.1} parent=47 // loop_pre_header
                _
              $region50: #{tpu_custom_call.1} parent=47 // loop_header
                %s468 = sphi 0, %s470
                %p469 = scmp.ge.s32.totalorder %s468, %s466
                %s473 = sphi 0, %s494
                %s474 = sphi %s437, %s497
                %s475 = sphi %s456, %s498
              $region51: #{tpu_custom_call.1} parent=47 // loop_header_branch
                %472 = sbr.rel (%p469) target = $region55
              $region52: #{tpu_custom_call.1} parent=47 // loop_body
                %v476 = vld [vmem:[%s474] sm:%s465]
                %477 = vst [vmem:[%s475] sm:%s465] %v476
                %v478 = vld [vmem:[%s474 + $0x8] sm:%s465]
                %479 = vst [vmem:[%s475 + $0x8] sm:%s465] %v478
                %v480 = vld [vmem:[%s474 + $0x10] sm:%s465]
                %481 = vst [vmem:[%s475 + $0x10] sm:%s465] %v480
                %v482 = vld [vmem:[%s474 + $0x18] sm:%s465]
                %483 = vst [vmem:[%s475 + $0x18] sm:%s465] %v482
                %v484 = vld [vmem:[%s474 + $0x20] sm:%s465]
                %485 = vst [vmem:[%s475 + $0x20] sm:%s465] %v484
                %v486 = vld [vmem:[%s474 + $0x28] sm:%s465]
                %487 = vst [vmem:[%s475 + $0x28] sm:%s465] %v486
                %v488 = vld [vmem:[%s474 + $0x30] sm:%s465]
                %489 = vst [vmem:[%s475 + $0x30] sm:%s465] %v488
                %v490 = vld [vmem:[%s474 + $0x38] sm:%s465]
                %491 = vst [vmem:[%s475 + $0x38] sm:%s465] %v490
                %s492 = sadd.s32 1, %s473
                %p493 = scmp.ge.s32.totalorder %s492, %s466
                %s494 = scalar_select %p493, 0, %s492
                %s495 = smul.u32 %s494, 64
                %s496 = smul.u32 %s494, 64
                %s497 = scalar_lea.vmem %s437, %s495 [#allocation2]
                %s498 = scalar_lea.vmem %s456, %s496
              $region53: #{tpu_custom_call.1} parent=47 // loop_footer
                %s470 = sadd.s32 %s468, 1
              $region54: #{tpu_custom_call.1} parent=47 // loop_footer_branch
                %467 = sbr.rel target = $region50
              $region55: #{tpu_custom_call.1} parent=47 // loop_exit
                _
              %s499 = sshrl.u32 %s452, 3
              %s500 = sand.u32 %s452, 7
              %s501 = smul.u32 %s499, 8
              %s502 = smul.u32 8, %s501
              %s503 = scalar_lea.vmem %s437, %s502 [#allocation2]
              %s504 = smul.u32 8, %s501
              %s505 = scalar_lea.vmem %s456, %s504
              // While loop
              $region56: #{tpu_custom_call.1} parent=47 // loop_pre_header
                _
              $region57: #{tpu_custom_call.1} parent=47 // loop_header
                %s507 = sphi 0, %s509
                %p508 = scmp.ge.s32.totalorder %s507, %s500
                %s512 = sphi 0, %s519
                %s513 = sphi %s503, %s522
                %s514 = sphi %s505, %s523
              $region58: #{tpu_custom_call.1} parent=47 // loop_header_branch
                %511 = sbr.rel (%p508) target = $region62
              $region59: #{tpu_custom_call.1} parent=47 // loop_body
                %v515 = vld [vmem:[%s513] sm:%s465]
                %516 = vst [vmem:[%s514] sm:%s465] %v515
                %s517 = sadd.s32 1, %s512
                %p518 = scmp.ge.s32.totalorder %s517, %s500
                %s519 = scalar_select %p518, 0, %s517
                %s520 = smul.u32 %s519, 8
                %s521 = smul.u32 %s519, 8
                %s522 = scalar_lea.vmem %s503, %s520 [#allocation2]
                %s523 = scalar_lea.vmem %s505, %s521
              $region60: #{tpu_custom_call.1} parent=47 // loop_footer
                %s509 = sadd.s32 %s507, 1
              $region61: #{tpu_custom_call.1} parent=47 // loop_footer_branch
                %506 = sbr.rel target = $region57
              $region62: #{tpu_custom_call.1} parent=47 // loop_exit
                _
            $region48: #{tpu_custom_call.1} parent=39 // pred_fallthru
              _
          $region40: #{tpu_custom_call.1} parent=35 // pred_fallthru
            _
          %586 = vnop
        $region36: #{tpu_custom_call.1} parent=31 // pred_fallthru
          _
        // Predicated region
        $region85: #{tpu_custom_call.1} parent=31 // pred_check
          %p587 = pneg %p129
        $region86: #{tpu_custom_call.1} parent=31 // pred_check_branch
          %589 = sbr.rel (%p587) target = $region88
        $region87: #{tpu_custom_call.1} parent=31 // pred_region
          %s590 = smul.u32 8, %s17
          %s591 = ssub.s32 19, %s590
          %p592 = scmp.lt.s32.totalorder %s591, 8
          %s593 = scalar_select %p592, %s591, 8
          %s594 = smul.u32 8, %s593
          %p595 = scmp.ne.s32.totalorder 0, %s594
          %s596 = smul.addr %s590, 8
          %s597 = scalar_lea.vmem %s4, %s596
          // Predicated region
          $region89: #{tpu_custom_call.1} parent=87 // pred_check
            %p598 = pneg %p595
          $region90: #{tpu_custom_call.1} parent=87 // pred_check_branch
            %600 = sbr.rel (%p598) target = $region92
          $region91: #{tpu_custom_call.1} parent=87 // pred_region
            // Predicated region
            $region93: #{tpu_custom_call.1} parent=91 // pred_check
              _
            $region94: #{tpu_custom_call.1} parent=91 // pred_check_branch
              %602 = sbr.rel (0) target = $region96
            $region95: #{tpu_custom_call.1} parent=91 // pred_region
              // Predicated region
              $region115: #{tpu_custom_call.1} parent=95 // pred_check
                _
              $region116: #{tpu_custom_call.1} parent=95 // pred_check_branch
                %666 = sbr.rel (0) target = $region118
              $region117: #{tpu_custom_call.1} parent=95 // pred_region
                %s667 = sshrl.u32 %s593, 3
                // While loop
                $region119: #{tpu_custom_call.1} parent=117 // loop_pre_header
                  _
                $region120: #{tpu_custom_call.1} parent=117 // loop_header
                  %s669 = sphi 0, %s671
                  %p670 = scmp.ge.s32.totalorder %s669, %s667
                  %s674 = sphi 0, %s695
                  %s675 = sphi %s441, %s698
                  %s676 = sphi %s597, %s699
                $region121: #{tpu_custom_call.1} parent=117 // loop_header_branch
                  %673 = sbr.rel (%p670) target = $region125
                $region122: #{tpu_custom_call.1} parent=117 // loop_body
                  %v677 = vld [vmem:[%s675] sm:$0xff]
                  %678 = vst [vmem:[%s676] sm:$0xff] %v677
                  %v679 = vld [vmem:[%s675 + $0x8] sm:$0xff]
                  %680 = vst [vmem:[%s676 + $0x8] sm:$0xff] %v679
                  %v681 = vld [vmem:[%s675 + $0x10] sm:$0xff]
                  %682 = vst [vmem:[%s676 + $0x10] sm:$0xff] %v681
                  %v683 = vld [vmem:[%s675 + $0x18] sm:$0xff]
                  %684 = vst [vmem:[%s676 + $0x18] sm:$0xff] %v683
                  %v685 = vld [vmem:[%s675 + $0x20] sm:$0xff]
                  %686 = vst [vmem:[%s676 + $0x20] sm:$0xff] %v685
                  %v687 = vld [vmem:[%s675 + $0x28] sm:$0xff]
                  %688 = vst [vmem:[%s676 + $0x28] sm:$0xff] %v687
                  %v689 = vld [vmem:[%s675 + $0x30] sm:$0xff]
                  %690 = vst [vmem:[%s676 + $0x30] sm:$0xff] %v689
                  %v691 = vld [vmem:[%s675 + $0x38] sm:$0xff]
                  %692 = vst [vmem:[%s676 + $0x38] sm:$0xff] %v691
                  %s693 = sadd.s32 1, %s674
                  %p694 = scmp.ge.s32.totalorder %s693, %s667
                  %s695 = scalar_select %p694, 0, %s693
                  %s696 = smul.u32 %s695, 64
                  %s697 = smul.u32 %s695, 64
                  %s698 = scalar_lea.vmem %s441, %s696 [#allocation3]
                  %s699 = scalar_lea.vmem %s597, %s697
                $region123: #{tpu_custom_call.1} parent=117 // loop_footer
                  %s671 = sadd.s32 %s669, 1
                $region124: #{tpu_custom_call.1} parent=117 // loop_footer_branch
                  %668 = sbr.rel target = $region120
                $region125: #{tpu_custom_call.1} parent=117 // loop_exit
                  _
                %s700 = sshrl.u32 %s593, 3
                %s701 = sand.u32 %s593, 7
                %s702 = smul.u32 %s700, 8
                %s703 = smul.u32 8, %s702
                %s704 = scalar_lea.vmem %s441, %s703 [#allocation3]
                %s705 = smul.u32 8, %s702
                %s706 = scalar_lea.vmem %s597, %s705
                // While loop
                $region126: #{tpu_custom_call.1} parent=117 // loop_pre_header
                  _
                $region127: #{tpu_custom_call.1} parent=117 // loop_header
                  %s708 = sphi 0, %s710
                  %p709 = scmp.ge.s32.totalorder %s708, %s701
                  %s713 = sphi 0, %s720
                  %s714 = sphi %s704, %s723
                  %s715 = sphi %s706, %s724
                $region128: #{tpu_custom_call.1} parent=117 // loop_header_branch
                  %712 = sbr.rel (%p709) target = $region132
                $region129: #{tpu_custom_call.1} parent=117 // loop_body
                  %v716 = vld [vmem:[%s714] sm:$0xff]
                  %717 = vst [vmem:[%s715] sm:$0xff] %v716
                  %s718 = sadd.s32 1, %s713
                  %p719 = scmp.ge.s32.totalorder %s718, %s701
                  %s720 = scalar_select %p719, 0, %s718
                  %s721 = smul.u32 %s720, 8
                  %s722 = smul.u32 %s720, 8
                  %s723 = scalar_lea.vmem %s704, %s721 [#allocation3]
                  %s724 = scalar_lea.vmem %s706, %s722
                $region130: #{tpu_custom_call.1} parent=117 // loop_footer
                  %s710 = sadd.s32 %s708, 1
                $region131: #{tpu_custom_call.1} parent=117 // loop_footer_branch
                  %707 = sbr.rel target = $region127
                $region132: #{tpu_custom_call.1} parent=117 // loop_exit
                  _
              $region118: #{tpu_custom_call.1} parent=95 // pred_fallthru
                _
              // Predicated region
              $region133: #{tpu_custom_call.1} parent=95 // pred_check
                _
              $region134: #{tpu_custom_call.1} parent=95 // pred_check_branch
                %726 = sbr.rel target = $region136
              $region135: #{tpu_custom_call.1} parent=95 // pred_region
                _
              $region136: #{tpu_custom_call.1} parent=95 // pred_fallthru
                _
            $region96: #{tpu_custom_call.1} parent=91 // pred_fallthru
              _
            // Predicated region
            $region97: #{tpu_custom_call.1} parent=91 // pred_check
              _
            $region98: #{tpu_custom_call.1} parent=91 // pred_check_branch
              %604 = sbr.rel target = $region100
            $region99: #{tpu_custom_call.1} parent=91 // pred_region
              %s606 = ssub.s32 256, 1
              %s607 = sshrl.u32 %s593, 3
              // While loop
              $region101: #{tpu_custom_call.1} parent=99 // loop_pre_header
                _
              $region102: #{tpu_custom_call.1} parent=99 // loop_header
                %s609 = sphi 0, %s611
                %p610 = scmp.ge.s32.totalorder %s609, %s607
                %s614 = sphi 0, %s635
                %s615 = sphi %s441, %s638
                %s616 = sphi %s597, %s639
              $region103: #{tpu_custom_call.1} parent=99 // loop_header_branch
                %613 = sbr.rel (%p610) target = $region107
              $region104: #{tpu_custom_call.1} parent=99 // loop_body
                %v617 = vld [vmem:[%s615] sm:%s606]
                %618 = vst [vmem:[%s616] sm:%s606] %v617
                %v619 = vld [vmem:[%s615 + $0x8] sm:%s606]
                %620 = vst [vmem:[%s616 + $0x8] sm:%s606] %v619
                %v621 = vld [vmem:[%s615 + $0x10] sm:%s606]
                %622 = vst [vmem:[%s616 + $0x10] sm:%s606] %v621
                %v623 = vld [vmem:[%s615 + $0x18] sm:%s606]
                %624 = vst [vmem:[%s616 + $0x18] sm:%s606] %v623
                %v625 = vld [vmem:[%s615 + $0x20] sm:%s606]
                %626 = vst [vmem:[%s616 + $0x20] sm:%s606] %v625
                %v627 = vld [vmem:[%s615 + $0x28] sm:%s606]
                %628 = vst [vmem:[%s616 + $0x28] sm:%s606] %v627
                %v629 = vld [vmem:[%s615 + $0x30] sm:%s606]
                %630 = vst [vmem:[%s616 + $0x30] sm:%s606] %v629
                %v631 = vld [vmem:[%s615 + $0x38] sm:%s606]
                %632 = vst [vmem:[%s616 + $0x38] sm:%s606] %v631
                %s633 = sadd.s32 1, %s614
                %p634 = scmp.ge.s32.totalorder %s633, %s607
                %s635 = scalar_select %p634, 0, %s633
                %s636 = smul.u32 %s635, 64
                %s637 = smul.u32 %s635, 64
                %s638 = scalar_lea.vmem %s441, %s636 [#allocation3]
                %s639 = scalar_lea.vmem %s597, %s637
              $region105: #{tpu_custom_call.1} parent=99 // loop_footer
                %s611 = sadd.s32 %s609, 1
              $region106: #{tpu_custom_call.1} parent=99 // loop_footer_branch
                %608 = sbr.rel target = $region102
              $region107: #{tpu_custom_call.1} parent=99 // loop_exit
                _
              %s640 = sshrl.u32 %s593, 3
              %s641 = sand.u32 %s593, 7
              %s642 = smul.u32 %s640, 8
              %s643 = smul.u32 8, %s642
              %s644 = scalar_lea.vmem %s441, %s643 [#allocation3]
              %s645 = smul.u32 8, %s642
              %s646 = scalar_lea.vmem %s597, %s645
              // While loop
              $region108: #{tpu_custom_call.1} parent=99 // loop_pre_header
                _
              $region109: #{tpu_custom_call.1} parent=99 // loop_header
                %s648 = sphi 0, %s650
                %p649 = scmp.ge.s32.totalorder %s648, %s641
                %s653 = sphi 0, %s660
                %s654 = sphi %s644, %s663
                %s655 = sphi %s646, %s664
              $region110: #{tpu_custom_call.1} parent=99 // loop_header_branch
                %652 = sbr.rel (%p649) target = $region114
              $region111: #{tpu_custom_call.1} parent=99 // loop_body
                %v656 = vld [vmem:[%s654] sm:%s606]
                %657 = vst [vmem:[%s655] sm:%s606] %v656
                %s658 = sadd.s32 1, %s653
                %p659 = scmp.ge.s32.totalorder %s658, %s641
                %s660 = scalar_select %p659, 0, %s658
                %s661 = smul.u32 %s660, 8
                %s662 = smul.u32 %s660, 8
                %s663 = scalar_lea.vmem %s644, %s661 [#allocation3]
                %s664 = scalar_lea.vmem %s646, %s662
              $region112: #{tpu_custom_call.1} parent=99 // loop_footer
                %s650 = sadd.s32 %s648, 1
              $region113: #{tpu_custom_call.1} parent=99 // loop_footer_branch
                %647 = sbr.rel target = $region109
              $region114: #{tpu_custom_call.1} parent=99 // loop_exit
                _
            $region100: #{tpu_custom_call.1} parent=91 // pred_fallthru
              _
          $region92: #{tpu_custom_call.1} parent=87 // pred_fallthru
            _
          %727 = vnop
        $region88: #{tpu_custom_call.1} parent=31 // pred_fallthru
          _
        // Predicated region
        $region137: #{tpu_custom_call.1} parent=31 // pred_check
          %p728 = pneg %p155
        $region138: #{tpu_custom_call.1} parent=31 // pred_check_branch
          %730 = sbr.rel (%p728) target = $region140
        $region139: #{tpu_custom_call.1} parent=31 // pred_region
          %s731 = smul.u32 8, %s17
          %s732 = ssub.s32 19, %s731
          %p733 = scmp.lt.s32.totalorder %s732, 8
          %s734 = scalar_select %p733, %s732, 8
          %s735 = smul.u32 8, %s734
          %p736 = scmp.ne.s32.totalorder 0, %s735
          %s737 = smul.addr %s731, 8
          %s738 = scalar_lea.vmem %s5, %s737
          // Predicated region
          $region141: #{tpu_custom_call.1} parent=139 // pred_check
            %p739 = pneg %p736
          $region142: #{tpu_custom_call.1} parent=139 // pred_check_branch
            %741 = sbr.rel (%p739) target = $region144
          $region143: #{tpu_custom_call.1} parent=139 // pred_region
            // Predicated region
            $region145: #{tpu_custom_call.1} parent=143 // pred_check
              _
            $region146: #{tpu_custom_call.1} parent=143 // pred_check_branch
              %743 = sbr.rel (0) target = $region148
            $region147: #{tpu_custom_call.1} parent=143 // pred_region
              // Predicated region
              $region167: #{tpu_custom_call.1} parent=147 // pred_check
                _
              $region168: #{tpu_custom_call.1} parent=147 // pred_check_branch
                %807 = sbr.rel (0) target = $region170
              $region169: #{tpu_custom_call.1} parent=147 // pred_region
                %s808 = sshrl.u32 %s734, 3
                // While loop
                $region171: #{tpu_custom_call.1} parent=169 // loop_pre_header
                  _
                $region172: #{tpu_custom_call.1} parent=169 // loop_header
                  %s810 = sphi 0, %s812
                  %p811 = scmp.ge.s32.totalorder %s810, %s808
                  %s815 = sphi 0, %s836
                  %s816 = sphi %s445, %s839
                  %s817 = sphi %s738, %s840
                $region173: #{tpu_custom_call.1} parent=169 // loop_header_branch
                  %814 = sbr.rel (%p811) target = $region177
                $region174: #{tpu_custom_call.1} parent=169 // loop_body
                  %v818 = vld [vmem:[%s816] sm:$0xff]
                  %819 = vst [vmem:[%s817] sm:$0xff] %v818
                  %v820 = vld [vmem:[%s816 + $0x8] sm:$0xff]
                  %821 = vst [vmem:[%s817 + $0x8] sm:$0xff] %v820
                  %v822 = vld [vmem:[%s816 + $0x10] sm:$0xff]
                  %823 = vst [vmem:[%s817 + $0x10] sm:$0xff] %v822
                  %v824 = vld [vmem:[%s816 + $0x18] sm:$0xff]
                  %825 = vst [vmem:[%s817 + $0x18] sm:$0xff] %v824
                  %v826 = vld [vmem:[%s816 + $0x20] sm:$0xff]
                  %827 = vst [vmem:[%s817 + $0x20] sm:$0xff] %v826
                  %v828 = vld [vmem:[%s816 + $0x28] sm:$0xff]
                  %829 = vst [vmem:[%s817 + $0x28] sm:$0xff] %v828
                  %v830 = vld [vmem:[%s816 + $0x30] sm:$0xff]
                  %831 = vst [vmem:[%s817 + $0x30] sm:$0xff] %v830
                  %v832 = vld [vmem:[%s816 + $0x38] sm:$0xff]
                  %833 = vst [vmem:[%s817 + $0x38] sm:$0xff] %v832
                  %s834 = sadd.s32 1, %s815
                  %p835 = scmp.ge.s32.totalorder %s834, %s808
                  %s836 = scalar_select %p835, 0, %s834
                  %s837 = smul.u32 %s836, 64
                  %s838 = smul.u32 %s836, 64
                  %s839 = scalar_lea.vmem %s445, %s837 [#allocation4]
                  %s840 = scalar_lea.vmem %s738, %s838
                $region175: #{tpu_custom_call.1} parent=169 // loop_footer
                  %s812 = sadd.s32 %s810, 1
                $region176: #{tpu_custom_call.1} parent=169 // loop_footer_branch
                  %809 = sbr.rel target = $region172
                $region177: #{tpu_custom_call.1} parent=169 // loop_exit
                  _
                %s841 = sshrl.u32 %s734, 3
                %s842 = sand.u32 %s734, 7
                %s843 = smul.u32 %s841, 8
                %s844 = smul.u32 8, %s843
                %s845 = scalar_lea.vmem %s445, %s844 [#allocation4]
                %s846 = smul.u32 8, %s843
                %s847 = scalar_lea.vmem %s738, %s846
                // While loop
                $region178: #{tpu_custom_call.1} parent=169 // loop_pre_header
                  _
                $region179: #{tpu_custom_call.1} parent=169 // loop_header
                  %s849 = sphi 0, %s851
                  %p850 = scmp.ge.s32.totalorder %s849, %s842
                  %s854 = sphi 0, %s861
                  %s855 = sphi %s845, %s864
                  %s856 = sphi %s847, %s865
                $region180: #{tpu_custom_call.1} parent=169 // loop_header_branch
                  %853 = sbr.rel (%p850) target = $region184
                $region181: #{tpu_custom_call.1} parent=169 // loop_body
                  %v857 = vld [vmem:[%s855] sm:$0xff]
                  %858 = vst [vmem:[%s856] sm:$0xff] %v857
                  %s859 = sadd.s32 1, %s854
                  %p860 = scmp.ge.s32.totalorder %s859, %s842
                  %s861 = scalar_select %p860, 0, %s859
                  %s862 = smul.u32 %s861, 8
                  %s863 = smul.u32 %s861, 8
                  %s864 = scalar_lea.vmem %s845, %s862 [#allocation4]
                  %s865 = scalar_lea.vmem %s847, %s863
                $region182: #{tpu_custom_call.1} parent=169 // loop_footer
                  %s851 = sadd.s32 %s849, 1
                $region183: #{tpu_custom_call.1} parent=169 // loop_footer_branch
                  %848 = sbr.rel target = $region179
                $region184: #{tpu_custom_call.1} parent=169 // loop_exit
                  _
              $region170: #{tpu_custom_call.1} parent=147 // pred_fallthru
                _
              // Predicated region
              $region185: #{tpu_custom_call.1} parent=147 // pred_check
                _
              $region186: #{tpu_custom_call.1} parent=147 // pred_check_branch
                %867 = sbr.rel target = $region188
              $region187: #{tpu_custom_call.1} parent=147 // pred_region
                _
              $region188: #{tpu_custom_call.1} parent=147 // pred_fallthru
                _
            $region148: #{tpu_custom_call.1} parent=143 // pred_fallthru
              _
            // Predicated region
            $region149: #{tpu_custom_call.1} parent=143 // pred_check
              _
            $region150: #{tpu_custom_call.1} parent=143 // pred_check_branch
              %745 = sbr.rel target = $region152
            $region151: #{tpu_custom_call.1} parent=143 // pred_region
              %s747 = ssub.s32 256, 1
              %s748 = sshrl.u32 %s734, 3
              // While loop
              $region153: #{tpu_custom_call.1} parent=151 // loop_pre_header
                _
              $region154: #{tpu_custom_call.1} parent=151 // loop_header
                %s750 = sphi 0, %s752
                %p751 = scmp.ge.s32.totalorder %s750, %s748
                %s755 = sphi 0, %s776
                %s756 = sphi %s445, %s779
                %s757 = sphi %s738, %s780
              $region155: #{tpu_custom_call.1} parent=151 // loop_header_branch
                %754 = sbr.rel (%p751) target = $region159
              $region156: #{tpu_custom_call.1} parent=151 // loop_body
                %v758 = vld [vmem:[%s756] sm:%s747]
                %759 = vst [vmem:[%s757] sm:%s747] %v758
                %v760 = vld [vmem:[%s756 + $0x8] sm:%s747]
                %761 = vst [vmem:[%s757 + $0x8] sm:%s747] %v760
                %v762 = vld [vmem:[%s756 + $0x10] sm:%s747]
                %763 = vst [vmem:[%s757 + $0x10] sm:%s747] %v762
                %v764 = vld [vmem:[%s756 + $0x18] sm:%s747]
                %765 = vst [vmem:[%s757 + $0x18] sm:%s747] %v764
                %v766 = vld [vmem:[%s756 + $0x20] sm:%s747]
                %767 = vst [vmem:[%s757 + $0x20] sm:%s747] %v766
                %v768 = vld [vmem:[%s756 + $0x28] sm:%s747]
                %769 = vst [vmem:[%s757 + $0x28] sm:%s747] %v768
                %v770 = vld [vmem:[%s756 + $0x30] sm:%s747]
                %771 = vst [vmem:[%s757 + $0x30] sm:%s747] %v770
                %v772 = vld [vmem:[%s756 + $0x38] sm:%s747]
                %773 = vst [vmem:[%s757 + $0x38] sm:%s747] %v772
                %s774 = sadd.s32 1, %s755
                %p775 = scmp.ge.s32.totalorder %s774, %s748
                %s776 = scalar_select %p775, 0, %s774
                %s777 = smul.u32 %s776, 64
                %s778 = smul.u32 %s776, 64
                %s779 = scalar_lea.vmem %s445, %s777 [#allocation4]
                %s780 = scalar_lea.vmem %s738, %s778
              $region157: #{tpu_custom_call.1} parent=151 // loop_footer
                %s752 = sadd.s32 %s750, 1
              $region158: #{tpu_custom_call.1} parent=151 // loop_footer_branch
                %749 = sbr.rel target = $region154
              $region159: #{tpu_custom_call.1} parent=151 // loop_exit
                _
              %s781 = sshrl.u32 %s734, 3
              %s782 = sand.u32 %s734, 7
              %s783 = smul.u32 %s781, 8
              %s784 = smul.u32 8, %s783
              %s785 = scalar_lea.vmem %s445, %s784 [#allocation4]
              %s786 = smul.u32 8, %s783
              %s787 = scalar_lea.vmem %s738, %s786
              // While loop
              $region160: #{tpu_custom_call.1} parent=151 // loop_pre_header
                _
              $region161: #{tpu_custom_call.1} parent=151 // loop_header
                %s789 = sphi 0, %s791
                %p790 = scmp.ge.s32.totalorder %s789, %s782
                %s794 = sphi 0, %s801
                %s795 = sphi %s785, %s804
                %s796 = sphi %s787, %s805
              $region162: #{tpu_custom_call.1} parent=151 // loop_header_branch
                %793 = sbr.rel (%p790) target = $region166
              $region163: #{tpu_custom_call.1} parent=151 // loop_body
                %v797 = vld [vmem:[%s795] sm:%s747]
                %798 = vst [vmem:[%s796] sm:%s747] %v797
                %s799 = sadd.s32 1, %s794
                %p800 = scmp.ge.s32.totalorder %s799, %s782
                %s801 = scalar_select %p800, 0, %s799
                %s802 = smul.u32 %s801, 8
                %s803 = smul.u32 %s801, 8
                %s804 = scalar_lea.vmem %s785, %s802 [#allocation4]
                %s805 = scalar_lea.vmem %s787, %s803
              $region164: #{tpu_custom_call.1} parent=151 // loop_footer
                %s791 = sadd.s32 %s789, 1
              $region165: #{tpu_custom_call.1} parent=151 // loop_footer_branch
                %788 = sbr.rel target = $region161
              $region166: #{tpu_custom_call.1} parent=151 // loop_exit
                _
            $region152: #{tpu_custom_call.1} parent=143 // pred_fallthru
              _
          $region144: #{tpu_custom_call.1} parent=139 // pred_fallthru
            _
          %868 = vnop
        $region140: #{tpu_custom_call.1} parent=31 // pred_fallthru
          _
      $region32: #{tpu_custom_call.1} parent=5 // pred_fallthru
        _
      %p869 = scmp.le.s32.totalorder 2, %s12
      // Predicated region
      $region189: #{tpu_custom_call.1} parent=5 // pred_check
        %p870 = pneg %p869
      $region190: #{tpu_custom_call.1} parent=5 // pred_check_branch
        %872 = sbr.rel (%p870) target = $region192
      $region191: #{tpu_custom_call.1} parent=5 // pred_region
        %s873 = ssub.s32 %s12, 2
        // Predicated region
        $region193: #{tpu_custom_call.1} parent=191 // pred_check
          %p874 = pneg %p109
        $region194: #{tpu_custom_call.1} parent=191 // pred_check_branch
          %876 = sbr.rel (%p874) target = $region196
        $region195: #{tpu_custom_call.1} parent=191 // pred_region
          %s877 = sand.u32 %s94, 1
          %s878 = sand.u32 %s94, 1
          %s879 = smul.addr %s878, 64
          %s880 = scalar_lea.vmem [#allocation2], %s879
        $region196: #{tpu_custom_call.1} parent=191 // pred_fallthru
          _
        // Predicated region
        $region197: #{tpu_custom_call.1} parent=191 // pred_check
          %p881 = pneg %p135
        $region198: #{tpu_custom_call.1} parent=191 // pred_check_branch
          %883 = sbr.rel (%p881) target = $region200
        $region199: #{tpu_custom_call.1} parent=191 // pred_region
          %s884 = sand.u32 %s120, 1
          %s885 = sand.u32 %s120, 1
          %s886 = smul.addr %s885, 64
          %s887 = scalar_lea.vmem [#allocation3], %s886
        $region200: #{tpu_custom_call.1} parent=191 // pred_fallthru
          _
        // Predicated region
        $region201: #{tpu_custom_call.1} parent=191 // pred_check
          %p888 = pneg %p161
        $region202: #{tpu_custom_call.1} parent=191 // pred_check_branch
          %890 = sbr.rel (%p888) target = $region204
        $region203: #{tpu_custom_call.1} parent=191 // pred_region
          %s891 = sand.u32 %s146, 1
          %s892 = sand.u32 %s146, 1
          %s893 = smul.addr %s892, 64
          %s894 = scalar_lea.vmem [#allocation4], %s893
        $region204: #{tpu_custom_call.1} parent=191 // pred_fallthru
          _
      $region192: #{tpu_custom_call.1} parent=5 // pred_fallthru
        _
    $region6: #{tpu_custom_call.1} parent=1 // loop_footer
      %s16 = sadd.s32 1, %s12
    $region7: #{tpu_custom_call.1} parent=1 // loop_footer_branch
      %11 = sbr.rel target = $region3
    $region8: #{tpu_custom_call.1} parent=1 // loop_exit
      _

</llo_original>
